<compile_context>
chip_gen: v5e
topology: v5e:2x2
jax: 0.10.0
libtpu: 0.0.40
codegen_flags: <defaults>
</compile_context>

<pallas_src>
import functools

import jax
import jax.numpy as jnp
from jax import lax
from jax.experimental import pallas as pl
from jax.experimental.pallas import tpu as pltpu


_VMEM_LIMIT_BYTES = 32 * 1024 * 1024       # explicit scoped-VMEM limit (safe on v5e/v6e/v7x)
_F_TILE_BUDGET_BYTES = 12 * 1024 * 1024    # budget for the 2 double-buffered F tiles


def _round_up(x, m):
    return ((x + m - 1) // m) * m


def _choose_tile_hw(c_pad, hw, itemsize):
    """Largest lane-aligned HW tile whose double-buffered pair fits the budget."""
    tile = _F_TILE_BUDGET_BYTES // (2 * c_pad * itemsize)
    tile = max(128, (tile // 128) * 128)
    tile = min(tile, _round_up(hw, 128))
    return tile


def _pad_features(x_nchw, feature_dtype):
    """(b,c,h,w) -> zero-padded (b, c_pad, hw_pad) flattened features + tiling info."""
    b, c, h, w = x_nchw.shape
    hw = h * w
    f = x_nchw.reshape(b, c, hw)
    if feature_dtype is not None:
        f = f.astype(feature_dtype)               # e.g. bf16: halves HBM read bytes
    c_pad = _round_up(max(c, 8), 8)               # sublane alignment
    tile_hw = _choose_tile_hw(c_pad, hw, jnp.dtype(f.dtype).itemsize)
    hw_pad = _round_up(hw, tile_hw)               # zero tail tile -> gram unaffected
    if c_pad != c or hw_pad != hw:
        f = jnp.pad(f, ((0, 0), (0, c_pad - c), (0, hw_pad - hw)))
    return f, c_pad, hw_pad, tile_hw, hw


# ---------------------------------------------------------------------------
# Kernels
# ---------------------------------------------------------------------------

def _gram_kernel(f_ref, g_ref, *, inv_hw):
    # f_ref : (C_pad, TILE_HW)  current HW slab of this batch's feature map
    # g_ref : (C_pad, C_pad)    resident f32 gram accumulator (same block for all k)
    k = pl.program_id(1)

    @pl.when(k == 0)
    def _():
        g_ref[...] = jnp.zeros_like(g_ref)

    f = f_ref[...]
    # Contract the last (lane) axis of both operands: F @ F^T without a transpose.
    g_ref[...] += lax.dot_general(
        f, f,
        dimension_numbers=(((1,), (1,)), ((), ())),
        preferred_element_type=jnp.float32,
    )

    @pl.when(k == pl.num_programs(1) - 1)
    def _():
        g_ref[...] = g_ref[...] * jnp.float32(inv_hw)


def _style_sse_kernel(f_ref, tgt_ref, sse_ref, acc_ref, *, inv_hw):
    # f_ref   : (C_pad, TILE_HW)  feature slab
    # tgt_ref : (C_pad, C_pad)    padded target gram for this batch
    # sse_ref : (1, 1)            per-batch sum-of-squared-errors output
    # acc_ref : (C_pad, C_pad)    VMEM f32 gram accumulator (scratch)
    k = pl.program_id(1)

    @pl.when(k == 0)
    def _():
        acc_ref[...] = jnp.zeros_like(acc_ref)

    f = f_ref[...]
    acc_ref[...] += lax.dot_general(
        f, f,
        dimension_numbers=(((1,), (1,)), ((), ())),
        preferred_element_type=jnp.float32,
    )

    @pl.when(k == pl.num_programs(1) - 1)
    def _():
        g = acc_ref[...] * jnp.float32(inv_hw)
        d = g - tgt_ref[...].astype(jnp.float32)
        sse_ref[...] = jnp.sum(d * d, keepdims=True)


# ---------------------------------------------------------------------------
# pallas_call wrappers
# ---------------------------------------------------------------------------

def _gram_pallas(f, c_pad, hw_pad, tile_hw, inv_hw):
    b = f.shape[0]
    n_k = hw_pad // tile_hw
    return pl.pallas_call(
        functools.partial(_gram_kernel, inv_hw=inv_hw),
        out_shape=jax.ShapeDtypeStruct((b, c_pad, c_pad), jnp.float32),
        grid_spec=pltpu.PrefetchScalarGridSpec(
            num_scalar_prefetch=0,
            grid=(b, n_k),
            in_specs=[
                pl.BlockSpec((None, c_pad, tile_hw), lambda i, k: (i, 0, k)),
            ],
            out_specs=pl.BlockSpec((None, c_pad, c_pad), lambda i, k: (i, 0, 0)),
        ),
        compiler_params=pltpu.CompilerParams(
            dimension_semantics=("parallel", "arbitrary"),
            vmem_limit_bytes=_VMEM_LIMIT_BYTES,
        ),
    )(f)


def _style_sse_pallas(f, tgt_padded, c_pad, hw_pad, tile_hw, inv_hw):
    b = f.shape[0]
    n_k = hw_pad // tile_hw
    return pl.pallas_call(
        functools.partial(_style_sse_kernel, inv_hw=inv_hw),
        out_shape=jax.ShapeDtypeStruct((b, 1, 1), jnp.float32),
        grid_spec=pltpu.PrefetchScalarGridSpec(
            num_scalar_prefetch=0,
            grid=(b, n_k),
            in_specs=[
                pl.BlockSpec((None, c_pad, tile_hw), lambda i, k: (i, 0, k)),
                pl.BlockSpec((None, c_pad, c_pad), lambda i, k: (i, 0, 0)),
            ],
            out_specs=pl.BlockSpec((None, 1, 1), lambda i, k: (i, 0, 0)),
            scratch_shapes=[pltpu.VMEM((c_pad, c_pad), jnp.float32)],
        ),
        compiler_params=pltpu.CompilerParams(
            dimension_semantics=("parallel", "arbitrary"),
            vmem_limit_bytes=_VMEM_LIMIT_BYTES,
        ),
    )(f, tgt_padded)


# ---------------------------------------------------------------------------
# Public API (matches the PyTorch module semantics)
# ---------------------------------------------------------------------------

def gram_matrix(x_nchw, feature_dtype=None):
    """bmm(F, F^T) / (h*w) with F = x.view(b, c, h*w); returns (b, c, c) f32."""
    b, c, h, w = x_nchw.shape
    f, c_pad, hw_pad, tile_hw, hw = _pad_features(x_nchw, feature_dtype)
    g = _gram_pallas(f, c_pad, hw_pad, tile_hw, 1.0 / float(hw))
    return g[:, :c, :c]


def style_loss(x_nchw, target_gram, feature_dtype=None):
    """mse_loss(gram(x), target_gram); gram never written back to HBM."""
    b, c, h, w = x_nchw.shape
    f, c_pad, hw_pad, tile_hw, hw = _pad_features(x_nchw, feature_dtype)
    tgt = target_gram.astype(jnp.float32)
    if c_pad != c:
        tgt = jnp.pad(tgt, ((0, 0), (0, c_pad - c), (0, c_pad - c)))
    sse = _style_sse_pallas(f, tgt, c_pad, hw_pad, tile_hw, 1.0 / float(hw))
    # Final mean over the *unpadded* gram elements (padded diffs are exactly 0).
    return jnp.sum(sse) / jnp.float32(b * c * c)


class StyleLoss:
    """JAX/Pallas port of the PyTorch StyleLoss module (forward pass)."""

    def __init__(self, target_feature, feature_dtype=None):
        self._feature_dtype = feature_dtype
        # target = gram_matrix(target_feature).detach()
        self.target = jax.lax.stop_gradient(
            gram_matrix(target_feature, feature_dtype=feature_dtype))
        self.loss = None

    def __call__(self, x):
        self.loss = style_loss(x, self.target, feature_dtype=self._feature_dtype)
        return x                                   # module returns its input unchanged


if __name__ == "__main__":
    key = jax.random.PRNGKey(0)
    k_tgt, k_in = jax.random.split(key)

    # Small NCHW shapes consistent with the module: batch=2, channels=4, spatial=16.
    b, c, h, w = 2, 4, 16, 16
    target_feature = jax.random.normal(k_tgt, (b, c, h, w), dtype=jnp.float32)
    x = jax.random.normal(k_in, (b, c, h, w), dtype=jnp.float32)

    style = StyleLoss(target_feature)
    out = style(x)
    jax.block_until_ready(out)
    loss = jax.block_until_ready(style.loss)

    # Reference check against plain JAX.
    def ref_gram(t):
        bb, cc, hh, ww = t.shape
        F = t.reshape(bb, cc, hh * ww)
        return jnp.einsum("bik,bjk->bij", F, F) / (hh * ww)

    ref_loss = jnp.mean((ref_gram(x) - ref_gram(target_feature)) ** 2)
    assert jnp.allclose(loss, ref_loss, rtol=1e-5, atol=1e-5), (loss, ref_loss)
    assert jnp.allclose(out, x)
    assert jnp.allclose(gram_matrix(x), ref_gram(x), rtol=1e-5, atol=1e-5)

    # bf16 feature-read fast path (halves HBM traffic); looser tolerance.
    style_bf16 = StyleLoss(target_feature, feature_dtype=jnp.bfloat16)
    style_bf16(x)
    loss_bf16 = jax.block_until_ready(style_bf16.loss)
    assert jnp.allclose(loss_bf16, ref_loss, rtol=1e-1, atol=1e-2), (loss_bf16, ref_loss)

    print("KERNEL_OK")
</pallas_src>

<mosaic_0001>
module attributes {stable_mosaic.version = 11 : i64} {
  func.func @_gram_kernel(%arg0: i32, %arg1: i32, %arg2: memref<1x8x256xf32, #tpu.memory_space<vmem>>, %arg3: memref<1x8x8xf32, #tpu.memory_space<vmem>>) attributes {dimension_semantics = [#tpu.dimension_semantics<parallel>, #tpu.dimension_semantics<arbitrary>], iteration_bounds = array<i64: 2, 1>, scalar_prefetch = 0 : i64, scratch_operands = 0 : i64, tpu.core_type = #tpu.core_type<tc>, window_params = [{transform_indices = @transform_0, window_bounds = array<i64: 1, 8, 256>}, {transform_indices = @transform_1, window_bounds = array<i64: 1, 8, 8>}]} {
    %c0_i32 = arith.constant 0 : i32
    %0 = arith.cmpi eq, %arg1, %c0_i32 : i32
    %1 = arith.extui %0 : i1 to i32
    %c0_i32_0 = arith.constant 0 : i32
    %2 = arith.cmpi ne, %1, %c0_i32_0 : i32
    scf.if %2 {
      %cst_11 = arith.constant 0.000000e+00 : f32
      %15 = vector.broadcast %cst_11 : f32 to vector<8x8xf32>
      %c0_12 = arith.constant 0 : index
      %c0_13 = arith.constant 0 : index
      %c0_14 = arith.constant 0 : index
      %16 = vector.load %arg3[%c0_12, %c0_13, %c0_14] : memref<1x8x8xf32, #tpu.memory_space<vmem>>, vector<1x8x8xf32>
      %17 = vector.shape_cast %16 : vector<1x8x8xf32> to vector<8x8xf32>
      %18 = vector.shape_cast %15 : vector<8x8xf32> to vector<1x8x8xf32>
      tpu.vector_store %arg3[%c0_12, %c0_13, %c0_14], %18 {strides = array<i32>} : memref<1x8x8xf32, #tpu.memory_space<vmem>>, vector<1x8x8xf32>,
    } else {
    }
    %c0 = arith.constant 0 : index
    %c0_1 = arith.constant 0 : index
    %c0_2 = arith.constant 0 : index
    %3 = vector.load %arg2[%c0, %c0_1, %c0_2] : memref<1x8x256xf32, #tpu.memory_space<vmem>>, vector<1x8x256xf32>
    %4 = vector.shape_cast %3 : vector<1x8x256xf32> to vector<8x256xf32>
    %c0_3 = arith.constant 0 : index
    %c0_4 = arith.constant 0 : index
    %c0_5 = arith.constant 0 : index
    %5 = vector.load %arg3[%c0_3, %c0_4, %c0_5] : memref<1x8x8xf32, #tpu.memory_space<vmem>>, vector<1x8x8xf32>
    %6 = vector.shape_cast %5 : vector<1x8x8xf32> to vector<8x8xf32>
    %cst = arith.constant dense<0.000000e+00> : vector<8x8xf32>
    %7 = tpu.matmul %4, %4, %cst {dimension_numbers = #tpu.dot_dimension_numbers<[1], [1], [0], [0], [0, 0, 1, 0], [], []>} : vector<8x256xf32>, vector<8x256xf32>, vector<8x8xf32> -> vector<8x8xf32>
    %8 = arith.addf %6, %7 : vector<8x8xf32>
    %c0_6 = arith.constant 0 : index
    %c0_7 = arith.constant 0 : index
    %c0_8 = arith.constant 0 : index
    %9 = vector.load %arg3[%c0_6, %c0_7, %c0_8] : memref<1x8x8xf32, #tpu.memory_space<vmem>>, vector<1x8x8xf32>
    %10 = vector.shape_cast %9 : vector<1x8x8xf32> to vector<8x8xf32>
    %11 = vector.shape_cast %8 : vector<8x8xf32> to vector<1x8x8xf32>
    tpu.vector_store %arg3[%c0_6, %c0_7, %c0_8], %11 {strides = array<i32>} : memref<1x8x8xf32, #tpu.memory_space<vmem>>, vector<1x8x8xf32>,
    %c0_i32_9 = arith.constant 0 : i32
    %12 = arith.cmpi eq, %arg1, %c0_i32_9 : i32
    %13 = arith.extui %12 : i1 to i32
    %c0_i32_10 = arith.constant 0 : i32
    %14 = arith.cmpi ne, %13, %c0_i32_10 : i32
    scf.if %14 {
      %c0_11 = arith.constant 0 : index
      %c0_12 = arith.constant 0 : index
      %c0_13 = arith.constant 0 : index
      %15 = vector.load %arg3[%c0_11, %c0_12, %c0_13] : memref<1x8x8xf32, #tpu.memory_space<vmem>>, vector<1x8x8xf32>
      %16 = vector.shape_cast %15 : vector<1x8x8xf32> to vector<8x8xf32>
      %cst_14 = arith.constant 3.906250e-03 : f32
      %17 = vector.broadcast %cst_14 : f32 to vector<8x8xf32>
      %18 = arith.mulf %16, %17 : vector<8x8xf32>
      %c0_15 = arith.constant 0 : index
      %c0_16 = arith.constant 0 : index
      %c0_17 = arith.constant 0 : index
      %19 = vector.load %arg3[%c0_15, %c0_16, %c0_17] : memref<1x8x8xf32, #tpu.memory_space<vmem>>, vector<1x8x8xf32>
      %20 = vector.shape_cast %19 : vector<1x8x8xf32> to vector<8x8xf32>
      %21 = vector.shape_cast %18 : vector<8x8xf32> to vector<1x8x8xf32>
      tpu.vector_store %arg3[%c0_15, %c0_16, %c0_17], %21 {strides = array<i32>} : memref<1x8x8xf32, #tpu.memory_space<vmem>>, vector<1x8x8xf32>,
    } else {
    }
    return
  }
  func.func @transform_0(%arg0: i32, %arg1: i32) -> (i32, i32, i32) {
    %c0_i32 = arith.constant 0 : i32
    %c0_i32_0 = arith.constant 0 : i32
    return %arg0, %c0_i32, %arg1 : i32, i32, i32
  }
  func.func @transform_1(%arg0: i32, %arg1: i32) -> (i32, i32, i32) {
    %c0_i32 = arith.constant 0 : i32
    %c0_i32_0 = arith.constant 0 : i32
    %c0_i32_1 = arith.constant 0 : i32
    return %arg0, %c0_i32, %c0_i32_0 : i32, i32, i32
  }
}

</mosaic_0001>

<llo_original>
// kernel: tpu_custom_call.1
$region0: #{tpu_custom_call.1}
  #allocation0 [shape = 'u32[]', space=smem, size = 0x4, offset = 0x4, fixed_abs, tag = 'smem constant byte address 0x4 - core index']
  #allocation1 [shape = 'u32[72,128]{1,0:T(1,128)}', space=vmem, size = 0x9000, scoped, tag = 'internal scratch']
  %s0 = inlined_call_operand.hbm [shape: f32[2,8,256], index: 0, kind: input, shape index: {}]
  %s1 = inlined_call_operand.hbm [shape: f32[2,8,8], index: 1, kind: output, shape index: {}]
  %s2 = sld [smem:[#allocation0]]
  $region49: #{tpu_custom_call.1} parent=0
    _
  %s4 = ssub.s32 1, %s2
  %s5 = scalar_select 0, %s4, %s2
  $region1: #{tpu_custom_call.1} parent=0
    #allocation2 [shape = 'u8[16384]{0}', space=vmem, size = 0x4000, scoped, tag = 'input window, operand 0']
    #allocation3 [shape = 's32[2]{0}', space=sflag, size = 0x8, scoped, tag = 'scoped memory for tpu_custom_call.1']
    #allocation4 [shape = 's32[2]{0}', space=sflag, size = 0x8, scoped, tag = 'scoped memory for tpu_custom_call.1']
    #allocation5 [shape = 'u8[8192]{0}', space=vmem, size = 0x2000, scoped, tag = 'output window, operand 0']
    %6 = vsyncpa [#allocation3], 0
    %s7 = scalar_lea.sflag [#allocation3], 1
    %8 = vsyncpa %s7, 0
    %9 = vsyncpa [#allocation4], 0
    %s10 = scalar_lea.sflag [#allocation4], 1
    %11 = vsyncpa %s10, 0
    loop: start=0, step=1, limit=4
    $region2: #{tpu_custom_call.1} parent=1 // loop_pre_header
      _
    $region3: #{tpu_custom_call.1} parent=1 // loop_header
      %s13 = sphi 0, %s17
      %p14 = scmp.ge.s32.totalorder %s13, 4
      %s20 = sphi 0, %s32
      %s21 = sphi 0, %s28
      %s22 = sphi 0, %s20
      %s23 = sphi 0, %s21
      %s24 = sphi 0, %s22
      %s25 = sphi 0, %s23
      %s37 = sphi 0, %s39
      %s40 = sphi 0, %s37
      %s41 = sphi 0, %s40
      %s57 = sphi 0, %s41
      %s63 = sphi 0, %s65
      %s66 = sphi 0, %s63
      %s67 = sphi 0, %s66
      %s83 = sphi 0, %s67
    $region4: #{tpu_custom_call.1} parent=1 // loop_header_branch
      %16 = sbr.rel (%p14) target = $region8
    $region5: #{tpu_custom_call.1} parent=1 // loop_body
      %s18 = ssub.s32 %s13, 1
      %s19 = ssub.s32 %s13, 2
      %s26 = sadd.s32 1, %s21
      %p27 = scmp.ge.s32.totalorder %s26, 1
      %s28 = scalar_select %p27, 0, %s26
      %s29 = sadd.s32 1, %s20
      %s30 = scalar_select %p27, %s29, %s20
      %p31 = scmp.ge.s32.totalorder %s30, 2
      %s32 = scalar_select %p31, 0, %s30
      %s33 = ssub.s32 %s20, %s32
      %s34 = ssub.s32 %s21, %s28
      %s35 = sor.u32 %s33, %s34
      %p36 = scmp.eq.s32.totalorder %s35, 0
      %s38 = sadd.s32 %s37, 1
      %s39 = scalar_select %p36, %s37, %s38
      %p42 = pneg %p36
      %p43 = scmp.eq.s32.totalorder %s13, 1
      %p44 = por %p42, %p43
      %p45 = scmp.ne.s32.totalorder %s37, %s40
      %p46 = scmp.eq.s32.totalorder %s13, 0
      %p47 = por %p45, %p46
      %p48 = scmp.ne.s32.totalorder %s37, %s40
      %p49 = scmp.eq.s32.totalorder %s18, 1
      %p50 = por %p48, %p49
      %p51 = scmp.ne.s32.totalorder %s40, %s41
      %p52 = scmp.eq.s32.totalorder %s18, 0
      %p53 = por %p51, %p52
      %p54 = scmp.ne.s32.totalorder %s40, %s41
      %p55 = scmp.eq.s32.totalorder %s19, 1
      %p56 = por %p54, %p55
      %p58 = scmp.ne.s32.totalorder %s41, %s57
      %p59 = scmp.eq.s32.totalorder %s19, 0
      %p60 = por %p58, %p59
      %s61 = ssub.s32 %s20, %s32
      %p62 = scmp.eq.s32.totalorder %s61, 0
      %s64 = sadd.s32 %s63, 1
      %s65 = scalar_select %p62, %s63, %s64
      %p68 = pneg %p62
      %p69 = scmp.eq.s32.totalorder %s13, 1
      %p70 = por %p68, %p69
      %p71 = scmp.ne.s32.totalorder %s63, %s66
      %p72 = scmp.eq.s32.totalorder %s13, 0
      %p73 = por %p71, %p72
      %p74 = scmp.ne.s32.totalorder %s63, %s66
      %p75 = scmp.eq.s32.totalorder %s18, 1
      %p76 = por %p74, %p75
      %p77 = scmp.ne.s32.totalorder %s66, %s67
      %p78 = scmp.eq.s32.totalorder %s18, 0
      %p79 = por %p77, %p78
      %p80 = scmp.ne.s32.totalorder %s66, %s67
      %p81 = scmp.eq.s32.totalorder %s19, 1
      %p82 = por %p80, %p81
      %p84 = scmp.ne.s32.totalorder %s67, %s83
      %p85 = scmp.eq.s32.totalorder %s19, 0
      %p86 = por %p84, %p85
      %p87 = scmp.le.s32.totalorder 1, %s13
      %p88 = scmp.lt.s32.totalorder %s13, 3
      %p89 = pnand %p87, %p88
      %p90 = pneg %p89
      // Predicated region
      $region9: #{tpu_custom_call.1} parent=5 // pred_check
        _
      $region10: #{tpu_custom_call.1} parent=5 // pred_check_branch
        %92 = sbr.rel (%p89) target = $region12
      $region11: #{tpu_custom_call.1} parent=5 // pred_region
        %s93 = ssub.s32 %s13, 1
      $region12: #{tpu_custom_call.1} parent=5 // pred_fallthru
        _
      %p94 = scmp.lt.s32.totalorder %s13, 2
      // Predicated region
      $region13: #{tpu_custom_call.1} parent=5 // pred_check
        %p95 = pneg %p94
      $region14: #{tpu_custom_call.1} parent=5 // pred_check_branch
        %97 = sbr.rel (%p95) target = $region16
      $region15: #{tpu_custom_call.1} parent=5 // pred_region
        // Predicated region
        $region17: #{tpu_custom_call.1} parent=15 // pred_check
          %p98 = pneg %p47
        $region18: #{tpu_custom_call.1} parent=15 // pred_check_branch
          %100 = sbr.rel (%p98) target = $region20
        $region19: #{tpu_custom_call.1} parent=15 // pred_region
          %s101 = sand.u32 %s37, 1
          %s102 = scalar_lea.sflag [#allocation3], %s101
          %s103 = sand.u32 %s37, 1
          %s104 = smul.addr %s103, 16
          %s105 = scalar_lea.vmem [#allocation2], %s104
          %s106 = smul.u32 2, %s21
          %108 = vsyncadd %s102, 0
          %s109 = smul.addr %s20, 2
          %s110 = sadd.s32 %s106, %s109
          %s111 = smul.addr %s110, 8
          %s112 = scalar_lea.hbm %s0, %s111
          %s114 = sshll.u32 %s112, 4
          %s115 = int_to_ptr.hbm [resolvable:$true] %s114
          %s116 = sshll.u32 %s105, 4
          %s117 = int_to_ptr.vmem [resolvable:$true] %s116
          %119 = dma.hbm_to_vmem [thread:$0]  %s115, 256, %s117, %s102
        $region20: #{tpu_custom_call.1} parent=15 // pred_fallthru
          _
      $region16: #{tpu_custom_call.1} parent=5 // pred_fallthru
        _
      %p120 = scmp.le.s32.totalorder 1, %s13
      %p121 = scmp.lt.s32.totalorder %s13, 3
      %p122 = pnand %p120, %p121
      %p123 = pneg %p122
      // Predicated region
      $region21: #{tpu_custom_call.1} parent=5 // pred_check
        _
      $region22: #{tpu_custom_call.1} parent=5 // pred_check_branch
        %125 = sbr.rel (%p122) target = $region24
      $region23: #{tpu_custom_call.1} parent=5 // pred_region
        %s126 = ssub.s32 %s13, 1
        %s127 = sand.u32 %s40, 1
        %s128 = scalar_lea.sflag [#allocation3], %s127
        %s129 = sand.u32 %s40, 1
        %s130 = smul.addr %s129, 16
        %s131 = scalar_lea.vmem [#allocation2], %s130
        // Predicated region
        $region25: #{tpu_custom_call.1} parent=23 // pred_check
          %p132 = pneg %p53
        $region26: #{tpu_custom_call.1} parent=23 // pred_check_branch
          %134 = sbr.rel (%p132) target = $region28
        $region27: #{tpu_custom_call.1} parent=23 // pred_region
          %136 = dma.done %s128, 256
        $region28: #{tpu_custom_call.1} parent=23 // pred_fallthru
          _
        %s137 = sand.u32 %s40, 1
        %s138 = scalar_lea.sflag [#allocation3], %s137
        %s139 = sand.u32 %s40, 1
        %s140 = smul.addr %s139, 16
        %s141 = scalar_lea.vmem [#allocation2], %s140
        %p142 = pneg %p53
        %p143 = pneg %p50
        %p144 = pneg %p79
        %p145 = pneg %p76
        %s146 = sand.u32 %s66, 1
        %s147 = scalar_lea.sflag [#allocation4], %s146
        %s148 = sand.u32 %s66, 1
        %s149 = smul.addr %s148, 8
        %s150 = scalar_lea.vmem [#allocation5], %s149
        %s151 = smul.u32 2, %s23
        %p152 = scmp.eq.s32.totalorder %s23, 0
        // Predicated region
        $region29: #{tpu_custom_call.1} parent=23 // pred_check
          %p153 = pneg %p152
        $region30: #{tpu_custom_call.1} parent=23 // pred_check_branch
          %155 = sbr.rel (%p153) target = $region32
        $region31: #{tpu_custom_call.1} parent=23 // pred_region
          %vm156 = vcmask 64512
          %157 = vst.msk [vmem:[%s150] sm:$0xff] %vm156, 0.0
        $region32: #{tpu_custom_call.1} parent=23 // pred_fallthru
          _
        %v158 = vld [vmem:[%s131] sm:$0xff]
        %v159 = vld [vmem:[%s131 + $0x8] sm:$0xff]
        %v160 = vld [vmem:[%s150] sm:$0xff]
        %161 = vmatpush.xpose.msra.mxu0 0.0
        %162 = vmatpush.xpose.msra.mxu0 0.0
        %163 = vmatpush.xpose.msra.mxu0 0.0
        %164 = vmatpush.xpose.msra.mxu0 0.0
        %165 = vmatpush.xpose.msra.mxu0 0.0
        %166 = vmatpush.xpose.msra.mxu0 0.0
        %167 = vmatpush.xpose.msra.mxu0 0.0
        %168 = vmatpush.xpose.msra.mxu0 0.0
        %169 = vmatpush.xpose.msra.mxu0 0.0
        %170 = vmatpush.xpose.msra.mxu0 0.0
        %171 = vmatpush.xpose.msra.mxu0 0.0
        %172 = vmatpush.xpose.msra.mxu0 0.0
        %173 = vmatpush.xpose.msra.mxu0 0.0
        %174 = vmatpush.xpose.msra.mxu0 0.0
        %175 = vmatpush.xpose.msra.mxu0 0.0
        %176 = vmatpush.xpose.msra.mxu0 %v158
        %177 = vmatmul.f32.gmra.mxu0 %v158
        %v178 = vpop.f32.mrf.mxu0
        %v179 = vadd.f32 0.0, %v178
        %180 = vdwg.mxu0
        %181 = vmatpush.xpose.msra.mxu0 0.0
        %182 = vmatpush.xpose.msra.mxu0 0.0
        %183 = vmatpush.xpose.msra.mxu0 0.0
        %184 = vmatpush.xpose.msra.mxu0 0.0
        %185 = vmatpush.xpose.msra.mxu0 0.0
        %186 = vmatpush.xpose.msra.mxu0 0.0
        %187 = vmatpush.xpose.msra.mxu0 0.0
        %188 = vmatpush.xpose.msra.mxu0 0.0
        %189 = vmatpush.xpose.msra.mxu0 0.0
        %190 = vmatpush.xpose.msra.mxu0 0.0
        %191 = vmatpush.xpose.msra.mxu0 0.0
        %192 = vmatpush.xpose.msra.mxu0 0.0
        %193 = vmatpush.xpose.msra.mxu0 0.0
        %194 = vmatpush.xpose.msra.mxu0 0.0
        %195 = vmatpush.xpose.msra.mxu0 0.0
        %196 = vmatpush.xpose.msra.mxu0 %v159
        %197 = vmatmul.f32.gmra.mxu0 %v159
        %v198 = vpop.f32.mrf.mxu0
        %v199 = vadd.f32 %v179, %v198
        %200 = vdwg.mxu0
        %v201 = vadd.f32 %v160, %v199
        %vm202 = vcmask 64512
        %203 = vst.msk [vmem:[%s150] sm:$0xff] %vm202, %v201
        // Predicated region
        $region33: #{tpu_custom_call.1} parent=23 // pred_check
          %p204 = pneg %p152
        $region34: #{tpu_custom_call.1} parent=23 // pred_check_branch
          %206 = sbr.rel (%p204) target = $region36
        $region35: #{tpu_custom_call.1} parent=23 // pred_region
          %v207 = vld [vmem:[%s150] sm:$0xff]
          %v208 = vmul.f32 %v207, 0.00390625
          %209 = vst.msk [vmem:[%s150] sm:$0xff] %vm202, %v208
        $region36: #{tpu_custom_call.1} parent=23 // pred_fallthru
          _
        %s210 = sand.u32 %s66, 1
        %s211 = scalar_lea.sflag [#allocation4], %s210
        %s212 = sand.u32 %s66, 1
        %s213 = smul.addr %s212, 8
        %s214 = scalar_lea.vmem [#allocation5], %s213
        // Predicated region
        $region37: #{tpu_custom_call.1} parent=23 // pred_check
          %p215 = pneg %p76
        $region38: #{tpu_custom_call.1} parent=23 // pred_check_branch
          %217 = sbr.rel (%p215) target = $region40
        $region39: #{tpu_custom_call.1} parent=23 // pred_region
          %219 = vsyncadd %s211, 0
          %s220 = smul.addr %s22, 8
          %s221 = scalar_lea.hbm %s1, %s220
          %s223 = sshll.u32 %s214, 4
          %s224 = int_to_ptr.vmem [resolvable:$true] %s223
          %s225 = sshll.u32 %s221, 4
          %s226 = int_to_ptr.hbm [resolvable:$true] %s225
          %228 = dma.vmem_to_hbm [thread:$0]  %s224, 128, %s226, %s211
        $region40: #{tpu_custom_call.1} parent=23 // pred_fallthru
          _
      $region24: #{tpu_custom_call.1} parent=5 // pred_fallthru
        _
      %p229 = scmp.le.s32.totalorder 2, %s13
      // Predicated region
      $region41: #{tpu_custom_call.1} parent=5 // pred_check
        %p230 = pneg %p229
      $region42: #{tpu_custom_call.1} parent=5 // pred_check_branch
        %232 = sbr.rel (%p230) target = $region44
      $region43: #{tpu_custom_call.1} parent=5 // pred_region
        %s233 = ssub.s32 %s13, 2
        // Predicated region
        $region45: #{tpu_custom_call.1} parent=43 // pred_check
          %p234 = pneg %p82
        $region46: #{tpu_custom_call.1} parent=43 // pred_check_branch
          %236 = sbr.rel (%p234) target = $region48
        $region47: #{tpu_custom_call.1} parent=43 // pred_region
          %s237 = sand.u32 %s67, 1
          %s238 = scalar_lea.sflag [#allocation4], %s237
          %s239 = sand.u32 %s67, 1
          %s240 = smul.addr %s239, 8
          %s241 = scalar_lea.vmem [#allocation5], %s240
          %243 = dma.done %s238, 128
        $region48: #{tpu_custom_call.1} parent=43 // pred_fallthru
          _
      $region44: #{tpu_custom_call.1} parent=5 // pred_fallthru
        _
    $region6: #{tpu_custom_call.1} parent=1 // loop_footer
      %s17 = sadd.s32 1, %s13
    $region7: #{tpu_custom_call.1} parent=1 // loop_footer_branch
      %12 = sbr.rel target = $region3
    $region8: #{tpu_custom_call.1} parent=1 // loop_exit
      _
    %244 = vsyncpa [#allocation3], 1
    %s245 = scalar_lea.sflag [#allocation3], 1
    %246 = vsyncpa %s245, 1
    %247 = vsyncpa [#allocation4], 1
    %s248 = scalar_lea.sflag [#allocation4], 1
    %249 = vsyncpa %s248, 1

</llo_original>
